<compile_context>
chip_gen: v7x
topology: tpu7x:2x2x1
jax: 0.10.0
libtpu: 0.0.40
codegen_flags: <defaults>
</compile_context>

<pallas_src>
import functools

import jax
import jax.numpy as jnp
from jax.experimental import pallas as pl
from jax.experimental.pallas import tpu as pltpu


# ----------------------------------------------------------------------------
# Pallas kernel: full SFB_SNActor forward hot path (one batch tile per step).
#   scales_ref : SMEM  [2]          (delta/sigma1, delta/sigma2)
#   x_ref      : VMEM  [tb, Ds]
#   w_ref      : VMEM  [R, C]       packed slab:
#                  rows 0 : Ds    , cols 0 : U0      -> W1^T
#                  rows 0 : Ds    , cols U0: U0+Da   -> K^T   (feedback gain)
#                  rows r2: r2+U0 , cols 0 : U1      -> W2^T
#                  rows r3: r3+U1 , cols 0 : Da      -> W3^T
#   out_ref    : VMEM  [tb, 2*Da]   lane-packed [act | mu]
# ----------------------------------------------------------------------------
def _sfb_snactor_kernel(scales_ref, x_ref, w_ref, out_ref, *,
                        Ds, U0, U1, Da, r2, r3):
    s1 = scales_ref[0]        # delta / sigma_max(W1)
    s2 = scales_ref[1]        # delta / sigma_max(W2)

    x = x_ref[...]            # [tb, Ds]

    # fc1 and fb_gain share the same input -> one MXU push:
    #   z = x @ [W1^T | K^T]  -> [tb, U0 + Da]
    z = jnp.dot(x, w_ref[0:Ds, 0:U0 + Da],
                preferred_element_type=jnp.float32)
    h1 = jnp.tanh(z[:, :U0] * s1)          # spectral-norm scale + delta folded in
    ufb = z[:, U0:U0 + Da]                 # feedback term x @ K^T

    # fc2 (spectral-normed, no bias) -> * (delta/sigma2) -> tanh
    h2 = jnp.tanh(
        jnp.dot(h1, w_ref[r2:r2 + U0, 0:U1],
                preferred_element_type=jnp.float32) * s2)

    # fc3 (plain linear, no bias) -> mu
    mu = jnp.dot(h2, w_ref[r3:r3 + U1, 0:Da],
                 preferred_element_type=jnp.float32)

    act = mu + ufb
    out_ref[...] = jnp.concatenate([act, mu], axis=1).astype(out_ref.dtype)


# ----------------------------------------------------------------------------
# Parameter packing (done once per weight update, NOT per forward).
# ----------------------------------------------------------------------------
def _round_up(n, m=8):
    return ((n + m - 1) // m) * m


def pack_params(params):
    """Pack W1^T, K^T, W2^T, W3^T into one VMEM slab with sublane-aligned
    row offsets.  Weights are packed RAW; 1/sigma is applied at runtime."""
    w1t = params["w1"].T.astype(jnp.float32)   # [Ds, U0]
    w2t = params["w2"].T.astype(jnp.float32)   # [U0, U1]
    w3t = params["w3"].T.astype(jnp.float32)   # [U1, Da]
    kt = params["K"].T.astype(jnp.float32)     # [Ds, Da]

    Ds, U0 = w1t.shape
    _, U1 = w2t.shape
    _, Da = w3t.shape

    r2 = _round_up(Ds)
    r3 = r2 + _round_up(U0)
    R = r3 + _round_up(U1)
    C = max(U0 + Da, U1, Da)

    slab = jnp.zeros((R, C), jnp.float32)
    slab = slab.at[0:Ds, 0:U0].set(w1t)
    slab = slab.at[0:Ds, U0:U0 + Da].set(kt)
    slab = slab.at[r2:r2 + U0, 0:U1].set(w2t)
    slab = slab.at[r3:r3 + U1, 0:Da].set(w3t)

    dims = dict(Ds=Ds, U0=U0, U1=U1, Da=Da, r2=r2, r3=r3)
    return slab, dims


# ----------------------------------------------------------------------------
# Spectral norm: one power-iteration step per forward against a persistent
# `u` buffer (matches torch.nn.utils.spectral_norm forward-time behaviour).
# ----------------------------------------------------------------------------
def init_spectral_u(key, out_dim):
    u = jax.random.normal(key, (out_dim,), jnp.float32)
    return u / (jnp.linalg.norm(u) + 1e-12)


def spectral_sigma_step(w, u):
    v = w.T @ u
    v = v / (jnp.linalg.norm(v) + 1e-12)
    u_new = w @ v
    u_new = u_new / (jnp.linalg.norm(u_new) + 1e-12)
    sigma = u_new @ (w @ v)
    return sigma, u_new


# ----------------------------------------------------------------------------
# Init (matches nn.Linear default init, weight shape [out, in], bias=False).
# ----------------------------------------------------------------------------
def init_params(key, dim_state, dim_action, units=(32, 32)):
    k1, k2, k3, k4 = jax.random.split(key, 4)

    def linear_w(k, out_f, in_f):
        bound = 1.0 / jnp.sqrt(in_f)
        return jax.random.uniform(k, (out_f, in_f), jnp.float32, -bound, bound)

    return dict(
        w1=linear_w(k1, units[0], dim_state),    # fc1.weight
        w2=linear_w(k2, units[1], units[0]),     # fc2.weight
        w3=linear_w(k3, dim_action, units[1]),   # fc3.weight
        K=linear_w(k4, dim_action, dim_state),   # fb_gain.weight
    )


# ----------------------------------------------------------------------------
# Forward wrapper.
# ----------------------------------------------------------------------------
def _pick_batch_tile(B):
    for tb in (512, 256, 128):
        if B % tb == 0:
            return tb
    return B   # single block covering the whole (small) batch


def sfb_snactor_forward(x, slab, dims, scales):
    """Returns (mu + ufb, mu, std) exactly like SFB_SNActor.forward.
    `scales` = [delta/sigma1, delta/sigma2] as a runtime f32[2] array."""
    B, Ds = x.shape
    assert Ds == dims["Ds"]
    Da, U0, U1 = dims["Da"], dims["U0"], dims["U1"]
    R, C = slab.shape

    tb = _pick_batch_tile(B)
    nb = B // tb

    kernel = functools.partial(_sfb_snactor_kernel, **dims)

    cost = pl.CostEstimate(
        flops=2 * B * (Ds * (U0 + Da) + U0 * U1 + U1 * Da) + B * Da,
        transcendentals=B * (U0 + U1),
        bytes_accessed=4 * (x.size + slab.size + scales.size + B * 2 * Da),
    )

    packed = pl.pallas_call(
        kernel,
        out_shape=jax.ShapeDtypeStruct((B, 2 * Da), jnp.float32),
        grid_spec=pltpu.PrefetchScalarGridSpec(
            num_scalar_prefetch=1,
            grid=(nb,),
            in_specs=[
                pl.BlockSpec((tb, Ds), lambda i, s: (i, 0)),   # x batch tile
                pl.BlockSpec((R, C), lambda i, s: (0, 0)),     # weight slab (resident)
            ],
            out_specs=pl.BlockSpec((tb, 2 * Da), lambda i, s: (i, 0)),
        ),
        compiler_params=pltpu.CompilerParams(
            dimension_semantics=("parallel",)),   # shards batch across v7x's 2 TCs
        cost_estimate=cost,
    )(scales, x, slab)

    act = packed[:, :Da]
    mu = packed[:, Da:2 * Da]
    std = jnp.ones_like(mu)    # constant ones: emitted here, not stored by the kernel
    return act, mu, std


# ----------------------------------------------------------------------------
# Reference (pure JAX) for a sanity check; uses the same folded scales.
# ----------------------------------------------------------------------------
def _reference(x, params, s1, s2):
    h = jnp.tanh((x @ params["w1"].T) * s1)
    h = jnp.tanh((h @ params["w2"].T) * s2)
    mu = h @ params["w3"].T
    ufb = x @ params["K"].T
    return mu + ufb, mu, jnp.ones_like(mu)


if __name__ == "__main__":
    key = jax.random.PRNGKey(0)
    kx, kp, ku1, ku2 = jax.random.split(key, 4)

    B, dim_state, dim_action = 8, 16, 4
    units = (32, 32)
    norm_scale = 1.0

    x = jax.random.normal(kx, (B, dim_state), jnp.float32)
    params = init_params(kp, dim_state, dim_action, units)

    # Persistent power-iteration state (like spectral_norm's `u` buffer),
    # updated one step per forward; sigma folded into scalar scales.
    u1 = init_spectral_u(ku1, units[0])
    u2 = init_spectral_u(ku2, units[1])
    sigma1, u1 = spectral_sigma_step(params["w1"], u1)
    sigma2, u2 = spectral_sigma_step(params["w2"], u2)
    scales = jnp.stack([norm_scale / sigma1, norm_scale / sigma2]).astype(jnp.float32)

    # Pack weights once (per weight update), not per step.
    slab, dims = pack_params(params)

    act, mu, std = sfb_snactor_forward(x, slab, dims, scales)
    jax.block_until_ready((act, mu, std))

    ract, rmu, rstd = _reference(x, params, scales[0], scales[1])
    assert act.shape == (B, dim_action) and mu.shape == (B, dim_action)
    assert jnp.allclose(act, ract, atol=1e-5), "mu+ufb mismatch"
    assert jnp.allclose(mu, rmu, atol=1e-5), "mu mismatch"
    assert jnp.allclose(std, rstd), "std mismatch"

    print("KERNEL_OK")
</pallas_src>

<mosaic_0001>
module attributes {stable_mosaic.version = 11 : i64} {
  func.func @_sfb_snactor_kernel(%arg0: i32, %arg1: memref<2xf32, #tpu.memory_space<smem>>, %arg2: memref<8x16xf32, #tpu.memory_space<vmem>>, %arg3: memref<80x36xf32, #tpu.memory_space<vmem>>, %arg4: memref<8x8xf32, #tpu.memory_space<vmem>>) attributes {dimension_semantics = [#tpu.dimension_semantics<parallel>], iteration_bounds = array<i64: 1>, scalar_prefetch = 1 : i64, scratch_operands = 0 : i64, tpu.core_type = #tpu.core_type<tc>, window_params = [{transform_indices = @transform_0, window_bounds = array<i64: 8, 16>}, {pipeline_mode = #tpu.pipeline_mode<synchronous>, transform_indices = @transform_1, window_bounds = array<i64: 80, 36>}, {transform_indices = @transform_2, window_bounds = array<i64: 8, 8>}]} {
    %c0 = arith.constant 0 : index
    %0 = memref.load %arg1[%c0] : memref<2xf32, #tpu.memory_space<smem>>
    %c1 = arith.constant 1 : index
    %1 = memref.load %arg1[%c1] : memref<2xf32, #tpu.memory_space<smem>>
    %c0_0 = arith.constant 0 : index
    %c0_1 = arith.constant 0 : index
    %2 = vector.load %arg2[%c0_0, %c0_1] : memref<8x16xf32, #tpu.memory_space<vmem>>, vector<8x16xf32>
    %c0_2 = arith.constant 0 : index
    %c0_3 = arith.constant 0 : index
    %3 = vector.load %arg3[%c0_2, %c0_3] : memref<80x36xf32, #tpu.memory_space<vmem>>, vector<16x36xf32>
    %cst = arith.constant dense<0.000000e+00> : vector<8x36xf32>
    %4 = tpu.matmul %2, %3, %cst {dimension_numbers = #tpu.dot_dimension_numbers<[1], [0], [0], [1], [0, 0, 1, 1], [], []>} : vector<8x16xf32>, vector<16x36xf32>, vector<8x36xf32> -> vector<8x36xf32>
    %5 = vector.extract_strided_slice %4 {offsets = [0, 0], sizes = [8, 32], strides = [1, 1]} : vector<8x36xf32> to vector<8x32xf32>
    %6 = vector.broadcast %0 : f32 to vector<8x32xf32>
    %7 = arith.mulf %5, %6 : vector<8x32xf32>
    %8 = math.tanh %7 : vector<8x32xf32>
    %9 = vector.extract_strided_slice %4 {offsets = [0, 32], sizes = [8, 4], strides = [1, 1]} : vector<8x36xf32> to vector<8x4xf32>
    %c16 = arith.constant 16 : index
    %c0_4 = arith.constant 0 : index
    %10 = vector.load %arg3[%c16, %c0_4] : memref<80x36xf32, #tpu.memory_space<vmem>>, vector<32x32xf32>
    %cst_5 = arith.constant dense<0.000000e+00> : vector<8x32xf32>
    %11 = tpu.matmul %8, %10, %cst_5 {dimension_numbers = #tpu.dot_dimension_numbers<[1], [0], [0], [1], [0, 0, 1, 1], [], []>} : vector<8x32xf32>, vector<32x32xf32>, vector<8x32xf32> -> vector<8x32xf32>
    %12 = vector.broadcast %1 : f32 to vector<8x32xf32>
    %13 = arith.mulf %11, %12 : vector<8x32xf32>
    %14 = math.tanh %13 : vector<8x32xf32>
    %c48 = arith.constant 48 : index
    %c0_6 = arith.constant 0 : index
    %15 = vector.load %arg3[%c48, %c0_6] : memref<80x36xf32, #tpu.memory_space<vmem>>, vector<32x4xf32>
    %cst_7 = arith.constant dense<0.000000e+00> : vector<8x4xf32>
    %16 = tpu.matmul %14, %15, %cst_7 {dimension_numbers = #tpu.dot_dimension_numbers<[1], [0], [0], [1], [0, 0, 1, 1], [], []>} : vector<8x32xf32>, vector<32x4xf32>, vector<8x4xf32> -> vector<8x4xf32>
    %17 = arith.addf %16, %9 : vector<8x4xf32>
    %18 = tpu.concatenate %17, %16 in 1 : vector<8x4xf32>, vector<8x4xf32> -> vector<8x8xf32>
    %c0_8 = arith.constant 0 : index
    %c0_9 = arith.constant 0 : index
    %19 = vector.load %arg4[%c0_8, %c0_9] : memref<8x8xf32, #tpu.memory_space<vmem>>, vector<8x8xf32>
    tpu.vector_store %arg4[%c0_8, %c0_9], %18 {strides = array<i32>} : memref<8x8xf32, #tpu.memory_space<vmem>>, vector<8x8xf32>,
    return
  }
  func.func @transform_0(%arg0: i32, %arg1: memref<2xf32, #tpu.memory_space<smem>>) -> (i32, i32) {
    %c0_i32 = arith.constant 0 : i32
    %c0_i32_0 = arith.constant 0 : i32
    return %arg0, %c0_i32 : i32, i32
  }
  func.func @transform_1(%arg0: i32, %arg1: memref<2xf32, #tpu.memory_space<smem>>) -> (i32, i32) {
    %c0_i32 = arith.constant 0 : i32
    %c0_i32_0 = arith.constant 0 : i32
    %c0_i32_1 = arith.constant 0 : i32
    return %c0_i32, %c0_i32_0 : i32, i32
  }
  func.func @transform_2(%arg0: i32, %arg1: memref<2xf32, #tpu.memory_space<smem>>) -> (i32, i32) {
    %c0_i32 = arith.constant 0 : i32
    %c0_i32_0 = arith.constant 0 : i32
    return %arg0, %c0_i32 : i32, i32
  }
}

</mosaic_0001>

<llo_original>
// kernel: tpu_custom_call.1
$region0: #{tpu_custom_call.1}
  #allocation0 [shape = 'u32[]', space=smem, size = 0x4, offset = 0x4, fixed_abs, tag = 'smem constant byte address 0x4 - core index']
  #allocation1 [shape = 'u32[144,128]{1,0:T(1,128)}', space=vmem, size = 0x12000, scoped, tag = 'internal scratch']
  #allocation2 [shape = 's32[1]{0}', space=sflag, size = 0x4, scoped, tag = 'scoped memory for tpu_custom_call.1']
  #allocation3 [shape = 'u8[512]{0}', space=smem, size = 0x200, scoped, tag = 'prefetched SMEM operand 0']
  %s0 = inlined_call_operand.vmem [shape: f32[2], index: 0, kind: input, shape index: {}]
  %s1 = inlined_call_operand.vmem [shape: f32[8,16], index: 1, kind: input, shape index: {}]
  %s2 = inlined_call_operand.vmem [shape: f32[80,36], index: 2, kind: input, shape index: {}]
  %s3 = inlined_call_operand.hbm [shape: f32[8,8], index: 3, kind: output, shape index: {}]
  %s4 = sld [smem:[#allocation0]]
  $region18: #{tpu_custom_call.1} parent=0
    _
  %s6 = ssub.s32 1, %s4
  %s7 = scalar_select 0, %s6, %s4
  %s8 = sshll.u32 %s0, 4
  %s9 = int_to_ptr.vmem [resolvable:$true] %s8
  %11 = dma.vmem_to_smem %s9, 16, [#allocation3], [#allocation2]
  %12 = dma.done [#allocation2], 16
  %13 = sfence
  $region1: #{tpu_custom_call.1} parent=0
    #allocation4 [shape = 'u8[4096]{0}', space=vmem, size = 0x1000, scoped, tag = 'output window, operand 0, single buffered']
    #allocation5 [shape = 's32[1]{0}', space=sflag, size = 0x4, scoped, tag = 'scoped memory for tpu_custom_call.1']
    %14 = vsyncpa [#allocation5], 0
    // Predicated region
    $region2: #{tpu_custom_call.1} parent=1 // pred_check
      _
    $region3: #{tpu_custom_call.1} parent=1 // pred_check_branch
      %16 = sbr.rel (0) target = $region5
    $region4: #{tpu_custom_call.1} parent=1 // pred_region
      _
    $region5: #{tpu_custom_call.1} parent=1 // pred_fallthru
      _
    // Predicated region
    $region6: #{tpu_custom_call.1} parent=1 // pred_check
      _
    $region7: #{tpu_custom_call.1} parent=1 // pred_check_branch
      %18 = sbr.rel (0) target = $region9
    $region8: #{tpu_custom_call.1} parent=1 // pred_region
      _
    $region9: #{tpu_custom_call.1} parent=1 // pred_fallthru
      _
    %s19 = sld [smem:[#allocation3]]
    %s20 = sld [smem:[#allocation3 + $0x1]]
    %v21 = vld [vmem:[%s1] sm:$0xff]
    %v22 = vld [vmem:[%s2] sm:$0xff]
    %v23 = vld [vmem:[%s2 + $0x8] sm:$0xff]
    %vm24 = vcmask 130048
    %v26 = vsel %vm24, %v21, 0
    %28 = vmatprep.subr.mxu0 0.0
    %29 = vmatpush1.msra.mxu0 %v22
    %30 = vmatprep.subr.mxu0 0.0
    %31 = vmatpush1.msra.mxu0 %v23
    %32 = vmatprep.subr.mxu0 0.0
    %33 = vmatpush1.msra.mxu0 0.0
    %34 = vmatprep.subr.mxu0 0.0
    %35 = vmatpush1.msra.mxu0 0.0
    %36 = vmatprep.subr.mxu0 0.0
    %37 = vmatpush1.msra.mxu0 0.0
    %38 = vmatprep.subr.mxu0 0.0
    %39 = vmatpush1.msra.mxu0 0.0
    %40 = vmatprep.subr.mxu0 0.0
    %41 = vmatpush1.msra.mxu0 0.0
    %42 = vmatprep.subr.mxu0 0.0
    %43 = vmatpush1.msra.mxu0 0.0
    %44 = vmatprep.subr.mxu0 0.0
    %45 = vmatpush1.msra.mxu0 0.0
    %46 = vmatprep.subr.mxu0 0.0
    %47 = vmatpush1.msra.mxu0 0.0
    %48 = vmatprep.subr.mxu0 0.0
    %49 = vmatpush1.msra.mxu0 0.0
    %50 = vmatprep.subr.mxu0 0.0
    %51 = vmatpush1.msra.mxu0 0.0
    %52 = vmatprep.subr.mxu0 0.0
    %53 = vmatpush1.msra.mxu0 0.0
    %54 = vmatprep.subr.mxu0 0.0
    %55 = vmatpush1.msra.mxu0 0.0
    %56 = vmatprep.subr.mxu0 0.0
    %57 = vmatpush1.msra.mxu0 0.0
    %58 = vmatprep.subr.mxu0 0.0
    %59 = vmatpush1.msra.mxu0 0.0
    %60 = vmatprep.subr.mxu0 0.0
    %61 = vmatpush1.msra.mxu0 0.0
    %62 = vmatprep.subr.mxu0 0.0
    %63 = vmatpush1.msra.mxu0 0.0
    %64 = vmatprep.subr.mxu0 0.0
    %65 = vmatpush1.msra.mxu0 0.0
    %66 = vmatprep.subr.mxu0 0.0
    %67 = vmatpush1.msra.mxu0 0.0
    %68 = vmatprep.subr.mxu0 0.0
    %69 = vmatpush1.msra.mxu0 0.0
    %70 = vmatprep.subr.mxu0 0.0
    %71 = vmatpush1.msra.mxu0 0.0
    %72 = vmatprep.subr.mxu0 0.0
    %73 = vmatpush1.msra.mxu0 0.0
    %74 = vmatprep.subr.mxu0 0.0
    %75 = vmatpush1.msra.mxu0 0.0
    %76 = vmatprep.subr.mxu0 0.0
    %77 = vmatpush1.msra.mxu0 0.0
    %78 = vmatprep.subr.mxu0 0.0
    %79 = vmatpush1.msra.mxu0 0.0
    %80 = vmatprep.subr.mxu0 0.0
    %81 = vmatpush1.msra.mxu0 0.0
    %82 = vmatprep.subr.mxu0 0.0
    %83 = vmatpush1.msra.mxu0 0.0
    %84 = vmatprep.subr.mxu0 0.0
    %85 = vmatpush1.msra.mxu0 0.0
    %86 = vmatprep.subr.mxu0 0.0
    %87 = vmatpush1.msra.mxu0 0.0
    %88 = vmatprep.subr.mxu0 0.0
    %89 = vmatpush1.msra.mxu0 0.0
    %90 = vmatprep.subr.mxu0 0.0
    %91 = vmatpush1.msra.mxu0 0.0
    %92 = vmatprep.mubr.f32.mxu0 0.0
    %93 = vmatmul.mubr.f32.gmra.mrb[0].mxu0 %v26
    %v94 = vpop.f32.mrb[0].mxu0
    %v95 = vadd.f32 0.0, %v94
    %v96 = vpop.f32.mrb[0].mxu0
    %97 = vdwg.mxu0
    %v98 = vstv %s19
    %v99 = vmul.f32 %v95, %v98
    %v100 = vtanh.pop %v99
    %v101 = vld [vmem:[%s2 + $0x10] sm:$0xff]
    %v102 = vld [vmem:[%s2 + $0x18] sm:$0xff]
    %v103 = vld [vmem:[%s2 + $0x20] sm:$0xff]
    %v104 = vld [vmem:[%s2 + $0x28] sm:$0xff]
    %vm105 = vcmask 261120
    %v107 = vsel %vm105, %v100, 0
    %109 = vmatprep.subr.mxu0 0.0
    %110 = vmatpush1.msra.mxu0 %v101
    %111 = vmatprep.subr.mxu0 0.0
    %112 = vmatpush1.msra.mxu0 %v102
    %113 = vmatprep.subr.mxu0 0.0
    %114 = vmatpush1.msra.mxu0 %v103
    %115 = vmatprep.subr.mxu0 0.0
    %116 = vmatpush1.msra.mxu0 %v104
    %117 = vmatprep.subr.mxu0 0.0
    %118 = vmatpush1.msra.mxu0 0.0
    %119 = vmatprep.subr.mxu0 0.0
    %120 = vmatpush1.msra.mxu0 0.0
    %121 = vmatprep.subr.mxu0 0.0
    %122 = vmatpush1.msra.mxu0 0.0
    %123 = vmatprep.subr.mxu0 0.0
    %124 = vmatpush1.msra.mxu0 0.0
    %125 = vmatprep.subr.mxu0 0.0
    %126 = vmatpush1.msra.mxu0 0.0
    %127 = vmatprep.subr.mxu0 0.0
    %128 = vmatpush1.msra.mxu0 0.0
    %129 = vmatprep.subr.mxu0 0.0
    %130 = vmatpush1.msra.mxu0 0.0
    %131 = vmatprep.subr.mxu0 0.0
    %132 = vmatpush1.msra.mxu0 0.0
    %133 = vmatprep.subr.mxu0 0.0
    %134 = vmatpush1.msra.mxu0 0.0
    %135 = vmatprep.subr.mxu0 0.0
    %136 = vmatpush1.msra.mxu0 0.0
    %137 = vmatprep.subr.mxu0 0.0
    %138 = vmatpush1.msra.mxu0 0.0
    %139 = vmatprep.subr.mxu0 0.0
    %140 = vmatpush1.msra.mxu0 0.0
    %141 = vmatprep.subr.mxu0 0.0
    %142 = vmatpush1.msra.mxu0 0.0
    %143 = vmatprep.subr.mxu0 0.0
    %144 = vmatpush1.msra.mxu0 0.0
    %145 = vmatprep.subr.mxu0 0.0
    %146 = vmatpush1.msra.mxu0 0.0
    %147 = vmatprep.subr.mxu0 0.0
    %148 = vmatpush1.msra.mxu0 0.0
    %149 = vmatprep.subr.mxu0 0.0
    %150 = vmatpush1.msra.mxu0 0.0
    %151 = vmatprep.subr.mxu0 0.0
    %152 = vmatpush1.msra.mxu0 0.0
    %153 = vmatprep.subr.mxu0 0.0
    %154 = vmatpush1.msra.mxu0 0.0
    %155 = vmatprep.subr.mxu0 0.0
    %156 = vmatpush1.msra.mxu0 0.0
    %157 = vmatprep.subr.mxu0 0.0
    %158 = vmatpush1.msra.mxu0 0.0
    %159 = vmatprep.subr.mxu0 0.0
    %160 = vmatpush1.msra.mxu0 0.0
    %161 = vmatprep.subr.mxu0 0.0
    %162 = vmatpush1.msra.mxu0 0.0
    %163 = vmatprep.subr.mxu0 0.0
    %164 = vmatpush1.msra.mxu0 0.0
    %165 = vmatprep.subr.mxu0 0.0
    %166 = vmatpush1.msra.mxu0 0.0
    %167 = vmatprep.subr.mxu0 0.0
    %168 = vmatpush1.msra.mxu0 0.0
    %169 = vmatprep.subr.mxu0 0.0
    %170 = vmatpush1.msra.mxu0 0.0
    %171 = vmatprep.subr.mxu0 0.0
    %172 = vmatpush1.msra.mxu0 0.0
    %173 = vmatprep.mubr.f32.mxu0 0.0
    %174 = vmatmul.mubr.f32.gmra.mrb[0].mxu0 %v107
    %v175 = vpop.f32.mrb[0].mxu0
    %v176 = vadd.f32 0.0, %v175
    %v177 = vpop.f32.mrb[0].mxu0
    %178 = vdwg.mxu0
    %v179 = vstv %s20
    %v180 = vmul.f32 %v176, %v179
    %v181 = vtanh.pop %v180
    %v182 = vld [vmem:[%s2 + $0x30] sm:$0xff]
    %v183 = vld [vmem:[%s2 + $0x38] sm:$0xff]
    %v184 = vld [vmem:[%s2 + $0x40] sm:$0xff]
    %v185 = vld [vmem:[%s2 + $0x48] sm:$0xff]
    %v187 = vsel %vm105, %v181, 0
    %189 = vmatprep.subr.mxu0 0.0
    %190 = vmatpush1.msra.mxu0 %v182
    %191 = vmatprep.subr.mxu0 0.0
    %192 = vmatpush1.msra.mxu0 %v183
    %193 = vmatprep.subr.mxu0 0.0
    %194 = vmatpush1.msra.mxu0 %v184
    %195 = vmatprep.subr.mxu0 0.0
    %196 = vmatpush1.msra.mxu0 %v185
    %197 = vmatprep.subr.mxu0 0.0
    %198 = vmatpush1.msra.mxu0 0.0
    %199 = vmatprep.subr.mxu0 0.0
    %200 = vmatpush1.msra.mxu0 0.0
    %201 = vmatprep.subr.mxu0 0.0
    %202 = vmatpush1.msra.mxu0 0.0
    %203 = vmatprep.subr.mxu0 0.0
    %204 = vmatpush1.msra.mxu0 0.0
    %205 = vmatprep.subr.mxu0 0.0
    %206 = vmatpush1.msra.mxu0 0.0
    %207 = vmatprep.subr.mxu0 0.0
    %208 = vmatpush1.msra.mxu0 0.0
    %209 = vmatprep.subr.mxu0 0.0
    %210 = vmatpush1.msra.mxu0 0.0
    %211 = vmatprep.subr.mxu0 0.0
    %212 = vmatpush1.msra.mxu0 0.0
    %213 = vmatprep.subr.mxu0 0.0
    %214 = vmatpush1.msra.mxu0 0.0
    %215 = vmatprep.subr.mxu0 0.0
    %216 = vmatpush1.msra.mxu0 0.0
    %217 = vmatprep.subr.mxu0 0.0
    %218 = vmatpush1.msra.mxu0 0.0
    %219 = vmatprep.subr.mxu0 0.0
    %220 = vmatpush1.msra.mxu0 0.0
    %221 = vmatprep.subr.mxu0 0.0
    %222 = vmatpush1.msra.mxu0 0.0
    %223 = vmatprep.subr.mxu0 0.0
    %224 = vmatpush1.msra.mxu0 0.0
    %225 = vmatprep.subr.mxu0 0.0
    %226 = vmatpush1.msra.mxu0 0.0
    %227 = vmatprep.subr.mxu0 0.0
    %228 = vmatpush1.msra.mxu0 0.0
    %229 = vmatprep.subr.mxu0 0.0
    %230 = vmatpush1.msra.mxu0 0.0
    %231 = vmatprep.subr.mxu0 0.0
    %232 = vmatpush1.msra.mxu0 0.0
    %233 = vmatprep.subr.mxu0 0.0
    %234 = vmatpush1.msra.mxu0 0.0
    %235 = vmatprep.subr.mxu0 0.0
    %236 = vmatpush1.msra.mxu0 0.0
    %237 = vmatprep.subr.mxu0 0.0
    %238 = vmatpush1.msra.mxu0 0.0
    %239 = vmatprep.subr.mxu0 0.0
    %240 = vmatpush1.msra.mxu0 0.0
    %241 = vmatprep.subr.mxu0 0.0
    %242 = vmatpush1.msra.mxu0 0.0
    %243 = vmatprep.subr.mxu0 0.0
    %244 = vmatpush1.msra.mxu0 0.0
    %245 = vmatprep.subr.mxu0 0.0
    %246 = vmatpush1.msra.mxu0 0.0
    %247 = vmatprep.subr.mxu0 0.0
    %248 = vmatpush1.msra.mxu0 0.0
    %249 = vmatprep.subr.mxu0 0.0
    %250 = vmatpush1.msra.mxu0 0.0
    %251 = vmatprep.subr.mxu0 0.0
    %252 = vmatpush1.msra.mxu0 0.0
    %253 = vmatprep.mubr.f32.mxu0 0.0
    %254 = vmatmul.mubr.f32.gmra.mrb[0].mxu0 %v187
    %v255 = vpop.f32.mrb[0].mxu0
    %v256 = vadd.f32 0.0, %v255
    %v257 = vpop.f32.mrb[0].mxu0
    %258 = vdwg.mxu0
    %260 = vrot.lane.b32.xlu0 %v95, 96
    %v261 = vpop.permute.xlu0 %260
    %v263 = vadd.f32 %v256, %v261
    %265 = vrot.lane.b32.xlu0 %v256, 4
    %v266 = vpop.permute.xlu0 %265
    %vm268 = vcmask 31744
    %v269 = vsel %vm268, %v263, %v266
    %vm270 = vcmask 64512
    %271 = vst.msk [vmem:[#allocation4] sm:$0xff] %vm270, %v269
    // Predicated region
    $region10: #{tpu_custom_call.1} parent=1 // pred_check
      _
    $region11: #{tpu_custom_call.1} parent=1 // pred_check_branch
      %273 = sbr.rel (0) target = $region13
    $region12: #{tpu_custom_call.1} parent=1 // pred_region
      %s275 = ssub.s32 128, 128
      %276 = vsyncadd [#allocation5], %s275
      %s278 = sshll.u32 [#allocation4], 4
      %s279 = int_to_ptr.vmem [resolvable:$true] %s278
      %281 = dma.vmem_to_hbm [thread:$0]  %s279, 128, %s3, [#allocation5]
    $region13: #{tpu_custom_call.1} parent=1 // pred_fallthru
      _
    // Predicated region
    $region14: #{tpu_custom_call.1} parent=1 // pred_check
      _
    $region15: #{tpu_custom_call.1} parent=1 // pred_check_branch
      %283 = sbr.rel (0) target = $region17
    $region16: #{tpu_custom_call.1} parent=1 // pred_region
      %284 = dma.done [#allocation5], 128
    $region17: #{tpu_custom_call.1} parent=1 // pred_fallthru
      _
    %285 = vsyncpa [#allocation5], 1

</llo_original>
